<compile_context>
chip_gen: v7x
topology: tpu7x:2x2x1
jax: 0.10.0
libtpu: 0.0.40
codegen_flags: <defaults>
</compile_context>

<pallas_src>
import functools
import math

import jax
import jax.numpy as jnp
from jax import lax
from jax.experimental import pallas as pl
from jax.experimental.pallas import tpu as pltpu


def _round_up(x, m):
    return (x + m - 1) // m * m


def _choose_tiles(n_ctx, heads, *, score_budget_bytes=8 << 20):
    """Pick (n_pad, tq, tk): padded sequence length and q / kv tile sizes."""
    def fits(tq, tk):
        return heads * tq * tk * 4 <= score_budget_bytes

    if n_ctx <= 512:
        # Single kv step: K/V fully resident per q tile; the online softmax
        # degenerates to one pass.
        n_pad = _round_up(n_ctx, 8)
        tq = tk = n_pad
    else:
        n_pad = _round_up(n_ctx, 512)
        tq, tk = 512, 512
        for cand in (1024, 2048):
            if n_pad % cand == 0 and fits(tq, cand):
                tk = cand
    # Bound the per-step f32 score working set (heads * tq * tk * 4B).
    while not fits(tq, tk) and tk % 16 == 0 and tk > 128:
        tk //= 2
    while not fits(tq, tk) and tq % 16 == 0 and tq > 128:
        tq //= 2
    return n_pad, tq, tk


def _qkv_prep_kernel(qkv_ref, ln_ref, qn_ref, kn_ref, vn_ref, *, heads, d):
    # qkv_ref: (1, tp, heads*3*d)  fused qkv rows (per-head interleaved q|k|v)
    # ln_ref : (4, d)  rows: gamma_q*scale, beta_q*scale, gamma_k, beta_k
    # outputs: (1, tp, heads*d) bf16 lane-dense slabs (q LN'd+scaled, k LN'd, v)
    gq = ln_ref[0:1, :]
    bq = ln_ref[1:2, :]
    gk = ln_ref[2:3, :]
    bk = ln_ref[3:4, :]
    eps = jnp.float32(1e-6)

    def layernorm(x, g, b):
        x = x.astype(jnp.float32)
        mu = jnp.mean(x, axis=-1, keepdims=True)
        xc = x - mu
        var = jnp.mean(xc * xc, axis=-1, keepdims=True)
        return (xc * lax.rsqrt(var + eps) * g + b).astype(jnp.bfloat16)

    x = qkv_ref[0]  # (tp, heads*3*d)
    qs, ks, vs = [], [], []
    for h in range(heads):  # static unroll; heads is small
        base = 3 * h * d
        qs.append(layernorm(x[:, base:base + d], gq, bq))
        ks.append(layernorm(x[:, base + d:base + 2 * d], gk, bk))
        vs.append(x[:, base + 2 * d:base + 3 * d].astype(jnp.bfloat16))
    qn_ref[0] = jnp.concatenate(qs, axis=-1)
    kn_ref[0] = jnp.concatenate(ks, axis=-1)
    vn_ref[0] = jnp.concatenate(vs, axis=-1)


def _flash_attn_kernel(q_ref, k_ref, v_ref, o_ref, m_ref, l_ref, acc_ref,
                       *, heads, d, tk, n_valid, masked):
    # q_ref : (1, tq, heads*d) bf16   LayerNormed + pre-scaled queries
    # k_ref : (1, tk, heads*d) bf16   LayerNormed keys
    # v_ref : (1, tk, heads*d) bf16   values
    # o_ref : (1, tq, heads*d)        lane-dense output slab (final layout)
    # m_ref, l_ref : (heads, tq, 1) f32   online-softmax running max / sum
    # acc_ref      : (tq, heads*d)  f32   lane-dense unnormalized output acc
    ki = pl.program_id(2)

    @pl.when(ki == 0)
    def _():
        m_ref[...] = jnp.full_like(m_ref, -jnp.inf)
        l_ref[...] = jnp.zeros_like(l_ref)
        acc_ref[...] = jnp.zeros_like(acc_ref)

    q_all = q_ref[0]  # (tq, heads*d)
    k_all = k_ref[0]  # (tk, heads*d)
    v_all = v_ref[0]  # (tk, heads*d)
    tq = q_all.shape[0]

    if masked:  # static: only generated when the sequence was padded
        col = ki * tk + lax.broadcasted_iota(jnp.int32, (1, tk), 1)
        bias = jnp.where(col < n_valid, 0.0, -jnp.inf).astype(jnp.float32)

    # Phase 1: all heads' QK^T pushed back-to-back on the MXU (lets the MXU
    # work of head h+1 overlap the VPU/EUP softmax math of head h).
    s_list = []
    for h in range(heads):
        sl = slice(h * d, (h + 1) * d)
        s = lax.dot_general(q_all[:, sl], k_all[:, sl],
                            (((1,), (1,)), ((), ())),
                            preferred_element_type=jnp.float32)
        if masked:
            s = s + bias
        s_list.append(s)

    # Phase 2: per-head online-softmax update + PV matmul.
    pv_list = []
    alpha_list = []
    for h in range(heads):
        s = s_list[h]
        m_prev = m_ref[h]                                         # (tq, 1)
        m_new = jnp.maximum(m_prev, jnp.max(s, axis=-1, keepdims=True))
        alpha = jnp.exp(m_prev - m_new)
        # bf16 exp: p feeds a bf16 MXU matmul anyway; doubles EUP throughput
        # on v6e/v7x where the exp stream dominates the step for small d.
        p = jnp.exp((s - m_new).astype(jnp.bfloat16))             # (tq, tk)
        l_ref[h] = alpha * l_ref[h] + jnp.sum(p, axis=-1, keepdims=True,
                                              dtype=jnp.float32)
        m_ref[h] = m_new
        pv_list.append(lax.dot_general(p, v_all[:, h * d:(h + 1) * d],
                                       (((1,), (0,)), ((), ())),
                                       preferred_element_type=jnp.float32))
        alpha_list.append(jnp.broadcast_to(alpha, (tq, d)))

    # Phase 3: single lane-dense accumulator update (one full-width RMW per
    # step instead of `heads` masked 32-lane read-modify-writes).
    acc_ref[...] = (jnp.concatenate(alpha_list, axis=-1) * acc_ref[...]
                    + jnp.concatenate(pv_list, axis=-1))

    @pl.when(ki == pl.num_programs(2) - 1)
    def _():
        # Deferred softmax normalization; exact reciprocal (finalize-only).
        inv = jnp.concatenate(
            [jnp.broadcast_to(1.0 / l_ref[h], (tq, d)) for h in range(heads)],
            axis=-1)
        o_ref[0] = (acc_ref[...] * inv).astype(o_ref.dtype)


def qkv_multihead_attention(qkv, heads, q_gamma, q_beta, k_gamma, k_beta):
    """Pallas implementation of QKVMultiheadAttention.forward (qk_norm=True).

    qkv: (bs, n_ctx, width) with width = heads * 3 * attn_ch
    returns: (bs, n_ctx, heads * attn_ch) in qkv.dtype
    """
    bs, n_ctx, width = qkv.shape
    attn_ch = width // heads // 3
    hd = heads * attn_ch

    # Fold the 1/sqrt(d) attention scale into the q LayerNorm affine params and
    # pack the four LN parameter vectors into one (4, d) array (single DMA).
    scale = 1.0 / math.sqrt(attn_ch)
    ln_params = jnp.stack([
        q_gamma.astype(jnp.float32) * scale,
        q_beta.astype(jnp.float32) * scale,
        k_gamma.astype(jnp.float32),
        k_beta.astype(jnp.float32),
    ], axis=0)

    n_pad, tq, tk = _choose_tiles(n_ctx, heads)
    if n_pad != n_ctx:
        qkv = jnp.pad(qkv, ((0, 0), (0, n_pad - n_ctx), (0, 0)))

    # <= v7x physical VMEM (64 MiB/TC); raises the v5e/v6e scoped defaults.
    vmem_limit = 48 * 1024 * 1024

    # ---- Pass 1: fused qkv split + q/k LayerNorm + bf16 cast ---------------
    tp = min(n_pad, 512)  # divides n_pad by construction
    q_n, k_n, v_b = pl.pallas_call(
        functools.partial(_qkv_prep_kernel, heads=heads, d=attn_ch),
        out_shape=[jax.ShapeDtypeStruct((bs, n_pad, hd), jnp.bfloat16)] * 3,
        grid_spec=pltpu.PrefetchScalarGridSpec(
            num_scalar_prefetch=0,
            grid=(bs, n_pad // tp),
            in_specs=[pl.BlockSpec((1, tp, width), lambda b, i: (b, i, 0)),
                      pl.BlockSpec((4, attn_ch), lambda b, i: (0, 0))],
            out_specs=[pl.BlockSpec((1, tp, hd), lambda b, i: (b, i, 0))] * 3),
        compiler_params=pltpu.CompilerParams(
            dimension_semantics=("parallel", "parallel"),
            vmem_limit_bytes=vmem_limit),
    )(qkv, ln_params)

    # ---- Pass 2: flash attention over bf16 pre-normalized q/k/v ------------
    grid = (bs, n_pad // tq, n_pad // tk)
    out = pl.pallas_call(
        functools.partial(_flash_attn_kernel, heads=heads, d=attn_ch, tk=tk,
                          n_valid=n_ctx, masked=(n_pad != n_ctx)),
        out_shape=jax.ShapeDtypeStruct((bs, n_pad, hd), qkv.dtype),
        grid_spec=pltpu.PrefetchScalarGridSpec(
            num_scalar_prefetch=0,
            grid=grid,
            in_specs=[pl.BlockSpec((1, tq, hd), lambda b, qi, ki: (b, qi, 0)),
                      pl.BlockSpec((1, tk, hd), lambda b, qi, ki: (b, ki, 0)),
                      pl.BlockSpec((1, tk, hd), lambda b, qi, ki: (b, ki, 0))],
            out_specs=pl.BlockSpec((1, tq, hd), lambda b, qi, ki: (b, qi, 0)),
            scratch_shapes=[
                pltpu.VMEM((heads, tq, 1), jnp.float32),   # running max
                pltpu.VMEM((heads, tq, 1), jnp.float32),   # running sum
                pltpu.VMEM((tq, hd), jnp.float32),         # lane-dense acc
            ]),
        compiler_params=pltpu.CompilerParams(
            # b / qi are sharded across v7x's two TensorCores; kv = reduction.
            dimension_semantics=("parallel", "parallel", "arbitrary"),
            vmem_limit_bytes=vmem_limit),
    )(q_n, k_n, v_b)

    if n_pad != n_ctx:
        out = out[:, :n_ctx, :]
    return out


def _reference(qkv, heads, q_gamma, q_beta, k_gamma, k_beta):
    """Pure-JAX f32 reference mirroring the PyTorch forward (qk_norm=True)."""
    bs, n_ctx, width = qkv.shape
    attn_ch = width // heads // 3
    qkv_r = qkv.reshape(bs, n_ctx, heads, 3 * attn_ch).astype(jnp.float32)
    q, k, v = jnp.split(qkv_r, 3, axis=-1)

    def ln(x, g, b):
        mu = jnp.mean(x, axis=-1, keepdims=True)
        var = jnp.mean((x - mu) ** 2, axis=-1, keepdims=True)
        return (x - mu) / jnp.sqrt(var + 1e-6) * g + b

    q = ln(q, q_gamma, q_beta)
    k = ln(k, k_gamma, k_beta)
    q, k, v = (t.transpose(0, 2, 1, 3) for t in (q, k, v))  # b h n d
    s = jnp.einsum("bhqd,bhkd->bhqk", q, k) / jnp.sqrt(attn_ch)
    p = jax.nn.softmax(s, axis=-1)
    o = jnp.einsum("bhqk,bhkd->bhqd", p, v)
    return o.transpose(0, 2, 1, 3).reshape(bs, n_ctx, heads * attn_ch)


if __name__ == "__main__":
    # Small shapes consistent with the module: heads=4, attn_ch=32 (heads*d = 128
    # lanes).  n_ctx=20 is deliberately not a multiple of 8 so the pad-and-mask
    # path is exercised against the reference.
    bs, n_ctx, heads, attn_ch = 2, 20, 4, 32
    width = heads * 3 * attn_ch  # 384

    key = jax.random.PRNGKey(0)
    k0, k1, k2, k3, k4 = jax.random.split(key, 5)

    qkv = jax.random.normal(k0, (bs, n_ctx, width), dtype=jnp.float32)
    q_gamma = 1.0 + 0.1 * jax.random.normal(k1, (attn_ch,), dtype=jnp.float32)
    q_beta = 0.1 * jax.random.normal(k2, (attn_ch,), dtype=jnp.float32)
    k_gamma = 1.0 + 0.1 * jax.random.normal(k3, (attn_ch,), dtype=jnp.float32)
    k_beta = 0.1 * jax.random.normal(k4, (attn_ch,), dtype=jnp.float32)

    out = qkv_multihead_attention(qkv, heads, q_gamma, q_beta, k_gamma, k_beta)
    out = jax.block_until_ready(out)

    ref = _reference(qkv, heads, q_gamma, q_beta, k_gamma, k_beta)
    assert out.shape == (bs, n_ctx, heads * attn_ch)
    # bf16 MXU inputs + bf16 exp with f32 accumulation -> bf16-class tolerance
    # vs the f32 reference.
    max_err = float(jnp.max(jnp.abs(out - ref)))
    assert jnp.allclose(out, ref, atol=5e-2, rtol=5e-2), (
        f"mismatch vs reference, max abs err={max_err}")

    print("KERNEL_OK")
</pallas_src>

<mosaic_0001>
module attributes {stable_mosaic.version = 11 : i64} {
  func.func @_qkv_prep_kernel(%arg0: i32, %arg1: i32, %arg2: memref<1x24x384xf32, #tpu.memory_space<vmem>>, %arg3: memref<4x32xf32, #tpu.memory_space<vmem>>, %arg4: memref<1x24x128xbf16, #tpu.memory_space<vmem>>, %arg5: memref<1x24x128xbf16, #tpu.memory_space<vmem>>, %arg6: memref<1x24x128xbf16, #tpu.memory_space<vmem>>) attributes {dimension_semantics = [#tpu.dimension_semantics<parallel>, #tpu.dimension_semantics<parallel>], iteration_bounds = array<i64: 2, 1>, scalar_prefetch = 0 : i64, scratch_operands = 0 : i64, tpu.core_type = #tpu.core_type<tc>, window_params = [{transform_indices = @transform_0, window_bounds = array<i64: 1, 24, 384>}, {pipeline_mode = #tpu.pipeline_mode<synchronous>, transform_indices = @transform_1, window_bounds = array<i64: 4, 32>}, {transform_indices = @transform_2, window_bounds = array<i64: 1, 24, 128>}, {transform_indices = @transform_3, window_bounds = array<i64: 1, 24, 128>}, {transform_indices = @transform_4, window_bounds = array<i64: 1, 24, 128>}]} {
    %c0 = arith.constant 0 : index
    %c0_0 = arith.constant 0 : index
    %0 = vector.load %arg3[%c0, %c0_0] : memref<4x32xf32, #tpu.memory_space<vmem>>, vector<1x32xf32>
    %c1 = arith.constant 1 : index
    %c0_1 = arith.constant 0 : index
    %1 = vector.load %arg3[%c1, %c0_1] : memref<4x32xf32, #tpu.memory_space<vmem>>, vector<1x32xf32>
    %c2 = arith.constant 2 : index
    %c0_2 = arith.constant 0 : index
    %2 = vector.load %arg3[%c2, %c0_2] : memref<4x32xf32, #tpu.memory_space<vmem>>, vector<1x32xf32>
    %c3 = arith.constant 3 : index
    %c0_3 = arith.constant 0 : index
    %3 = vector.load %arg3[%c3, %c0_3] : memref<4x32xf32, #tpu.memory_space<vmem>>, vector<1x32xf32>
    %c0_4 = arith.constant 0 : index
    %c0_5 = arith.constant 0 : index
    %c0_6 = arith.constant 0 : index
    %4 = vector.load %arg2[%c0_4, %c0_5, %c0_6] : memref<1x24x384xf32, #tpu.memory_space<vmem>>, vector<1x24x384xf32>
    %5 = vector.shape_cast %4 : vector<1x24x384xf32> to vector<24x384xf32>
    %6 = vector.extract_strided_slice %5 {offsets = [0, 0], sizes = [24, 32], strides = [1, 1]} : vector<24x384xf32> to vector<24x32xf32>
    %cst = arith.constant dense<0.000000e+00> : vector<24xf32>
    %7 = vector.multi_reduction <add>, %6, %cst [1] : vector<24x32xf32> to vector<24xf32>
    %8 = vector.shape_cast %7 : vector<24xf32> to vector<24x1xf32>
    %cst_7 = arith.constant 3.200000e+01 : f32
    %9 = vector.broadcast %cst_7 : f32 to vector<24x1xf32>
    %10 = arith.divf %8, %9 : vector<24x1xf32>
    %11 = vector.broadcast %10 : vector<24x1xf32> to vector<24x32xf32>
    %12 = arith.subf %6, %11 : vector<24x32xf32>
    %13 = arith.mulf %12, %12 : vector<24x32xf32>
    %cst_8 = arith.constant dense<0.000000e+00> : vector<24xf32>
    %14 = vector.multi_reduction <add>, %13, %cst_8 [1] : vector<24x32xf32> to vector<24xf32>
    %15 = vector.shape_cast %14 : vector<24xf32> to vector<24x1xf32>
    %cst_9 = arith.constant 3.200000e+01 : f32
    %16 = vector.broadcast %cst_9 : f32 to vector<24x1xf32>
    %17 = arith.divf %15, %16 : vector<24x1xf32>
    %cst_10 = arith.constant 9.99999997E-7 : f32
    %18 = vector.broadcast %cst_10 : f32 to vector<24x1xf32>
    %19 = arith.addf %17, %18 : vector<24x1xf32>
    %20 = math.rsqrt %19 : vector<24x1xf32>
    %21 = vector.broadcast %20 : vector<24x1xf32> to vector<24x32xf32>
    %22 = arith.mulf %12, %21 : vector<24x32xf32>
    %23 = vector.broadcast %0 : vector<1x32xf32> to vector<24x32xf32>
    %24 = arith.mulf %22, %23 : vector<24x32xf32>
    %25 = vector.broadcast %1 : vector<1x32xf32> to vector<24x32xf32>
    %26 = arith.addf %24, %25 : vector<24x32xf32>
    %27 = arith.truncf %26 : vector<24x32xf32> to vector<24x32xbf16>
    %28 = vector.extract_strided_slice %5 {offsets = [0, 32], sizes = [24, 32], strides = [1, 1]} : vector<24x384xf32> to vector<24x32xf32>
    %cst_11 = arith.constant dense<0.000000e+00> : vector<24xf32>
    %29 = vector.multi_reduction <add>, %28, %cst_11 [1] : vector<24x32xf32> to vector<24xf32>
    %30 = vector.shape_cast %29 : vector<24xf32> to vector<24x1xf32>
    %cst_12 = arith.constant 3.200000e+01 : f32
    %31 = vector.broadcast %cst_12 : f32 to vector<24x1xf32>
    %32 = arith.divf %30, %31 : vector<24x1xf32>
    %33 = vector.broadcast %32 : vector<24x1xf32> to vector<24x32xf32>
    %34 = arith.subf %28, %33 : vector<24x32xf32>
    %35 = arith.mulf %34, %34 : vector<24x32xf32>
    %cst_13 = arith.constant dense<0.000000e+00> : vector<24xf32>
    %36 = vector.multi_reduction <add>, %35, %cst_13 [1] : vector<24x32xf32> to vector<24xf32>
    %37 = vector.shape_cast %36 : vector<24xf32> to vector<24x1xf32>
    %cst_14 = arith.constant 3.200000e+01 : f32
    %38 = vector.broadcast %cst_14 : f32 to vector<24x1xf32>
    %39 = arith.divf %37, %38 : vector<24x1xf32>
    %cst_15 = arith.constant 9.99999997E-7 : f32
    %40 = vector.broadcast %cst_15 : f32 to vector<24x1xf32>
    %41 = arith.addf %39, %40 : vector<24x1xf32>
    %42 = math.rsqrt %41 : vector<24x1xf32>
    %43 = vector.broadcast %42 : vector<24x1xf32> to vector<24x32xf32>
    %44 = arith.mulf %34, %43 : vector<24x32xf32>
    %45 = vector.broadcast %2 : vector<1x32xf32> to vector<24x32xf32>
    %46 = arith.mulf %44, %45 : vector<24x32xf32>
    %47 = vector.broadcast %3 : vector<1x32xf32> to vector<24x32xf32>
    %48 = arith.addf %46, %47 : vector<24x32xf32>
    %49 = arith.truncf %48 : vector<24x32xf32> to vector<24x32xbf16>
    %50 = vector.extract_strided_slice %5 {offsets = [0, 64], sizes = [24, 32], strides = [1, 1]} : vector<24x384xf32> to vector<24x32xf32>
    %51 = arith.truncf %50 : vector<24x32xf32> to vector<24x32xbf16>
    %52 = vector.extract_strided_slice %5 {offsets = [0, 96], sizes = [24, 32], strides = [1, 1]} : vector<24x384xf32> to vector<24x32xf32>
    %cst_16 = arith.constant dense<0.000000e+00> : vector<24xf32>
    %53 = vector.multi_reduction <add>, %52, %cst_16 [1] : vector<24x32xf32> to vector<24xf32>
    %54 = vector.shape_cast %53 : vector<24xf32> to vector<24x1xf32>
    %cst_17 = arith.constant 3.200000e+01 : f32
    %55 = vector.broadcast %cst_17 : f32 to vector<24x1xf32>
    %56 = arith.divf %54, %55 : vector<24x1xf32>
    %57 = vector.broadcast %56 : vector<24x1xf32> to vector<24x32xf32>
    %58 = arith.subf %52, %57 : vector<24x32xf32>
    %59 = arith.mulf %58, %58 : vector<24x32xf32>
    %cst_18 = arith.constant dense<0.000000e+00> : vector<24xf32>
    %60 = vector.multi_reduction <add>, %59, %cst_18 [1] : vector<24x32xf32> to vector<24xf32>
    %61 = vector.shape_cast %60 : vector<24xf32> to vector<24x1xf32>
    %cst_19 = arith.constant 3.200000e+01 : f32
    %62 = vector.broadcast %cst_19 : f32 to vector<24x1xf32>
    %63 = arith.divf %61, %62 : vector<24x1xf32>
    %cst_20 = arith.constant 9.99999997E-7 : f32
    %64 = vector.broadcast %cst_20 : f32 to vector<24x1xf32>
    %65 = arith.addf %63, %64 : vector<24x1xf32>
    %66 = math.rsqrt %65 : vector<24x1xf32>
    %67 = vector.broadcast %66 : vector<24x1xf32> to vector<24x32xf32>
    %68 = arith.mulf %58, %67 : vector<24x32xf32>
    %69 = vector.broadcast %0 : vector<1x32xf32> to vector<24x32xf32>
    %70 = arith.mulf %68, %69 : vector<24x32xf32>
    %71 = vector.broadcast %1 : vector<1x32xf32> to vector<24x32xf32>
    %72 = arith.addf %70, %71 : vector<24x32xf32>
    %73 = arith.truncf %72 : vector<24x32xf32> to vector<24x32xbf16>
    %74 = vector.extract_strided_slice %5 {offsets = [0, 128], sizes = [24, 32], strides = [1, 1]} : vector<24x384xf32> to vector<24x32xf32>
    %cst_21 = arith.constant dense<0.000000e+00> : vector<24xf32>
    %75 = vector.multi_reduction <add>, %74, %cst_21 [1] : vector<24x32xf32> to vector<24xf32>
    %76 = vector.shape_cast %75 : vector<24xf32> to vector<24x1xf32>
    %cst_22 = arith.constant 3.200000e+01 : f32
    %77 = vector.broadcast %cst_22 : f32 to vector<24x1xf32>
    %78 = arith.divf %76, %77 : vector<24x1xf32>
    %79 = vector.broadcast %78 : vector<24x1xf32> to vector<24x32xf32>
    %80 = arith.subf %74, %79 : vector<24x32xf32>
    %81 = arith.mulf %80, %80 : vector<24x32xf32>
    %cst_23 = arith.constant dense<0.000000e+00> : vector<24xf32>
    %82 = vector.multi_reduction <add>, %81, %cst_23 [1] : vector<24x32xf32> to vector<24xf32>
    %83 = vector.shape_cast %82 : vector<24xf32> to vector<24x1xf32>
    %cst_24 = arith.constant 3.200000e+01 : f32
    %84 = vector.broadcast %cst_24 : f32 to vector<24x1xf32>
    %85 = arith.divf %83, %84 : vector<24x1xf32>
    %cst_25 = arith.constant 9.99999997E-7 : f32
    %86 = vector.broadcast %cst_25 : f32 to vector<24x1xf32>
    %87 = arith.addf %85, %86 : vector<24x1xf32>
    %88 = math.rsqrt %87 : vector<24x1xf32>
    %89 = vector.broadcast %88 : vector<24x1xf32> to vector<24x32xf32>
    %90 = arith.mulf %80, %89 : vector<24x32xf32>
    %91 = vector.broadcast %2 : vector<1x32xf32> to vector<24x32xf32>
    %92 = arith.mulf %90, %91 : vector<24x32xf32>
    %93 = vector.broadcast %3 : vector<1x32xf32> to vector<24x32xf32>
    %94 = arith.addf %92, %93 : vector<24x32xf32>
    %95 = arith.truncf %94 : vector<24x32xf32> to vector<24x32xbf16>
    %96 = vector.extract_strided_slice %5 {offsets = [0, 160], sizes = [24, 32], strides = [1, 1]} : vector<24x384xf32> to vector<24x32xf32>
    %97 = arith.truncf %96 : vector<24x32xf32> to vector<24x32xbf16>
    %98 = vector.extract_strided_slice %5 {offsets = [0, 192], sizes = [24, 32], strides = [1, 1]} : vector<24x384xf32> to vector<24x32xf32>
    %cst_26 = arith.constant dense<0.000000e+00> : vector<24xf32>
    %99 = vector.multi_reduction <add>, %98, %cst_26 [1] : vector<24x32xf32> to vector<24xf32>
    %100 = vector.shape_cast %99 : vector<24xf32> to vector<24x1xf32>
    %cst_27 = arith.constant 3.200000e+01 : f32
    %101 = vector.broadcast %cst_27 : f32 to vector<24x1xf32>
    %102 = arith.divf %100, %101 : vector<24x1xf32>
    %103 = vector.broadcast %102 : vector<24x1xf32> to vector<24x32xf32>
    %104 = arith.subf %98, %103 : vector<24x32xf32>
    %105 = arith.mulf %104, %104 : vector<24x32xf32>
    %cst_28 = arith.constant dense<0.000000e+00> : vector<24xf32>
    %106 = vector.multi_reduction <add>, %105, %cst_28 [1] : vector<24x32xf32> to vector<24xf32>
    %107 = vector.shape_cast %106 : vector<24xf32> to vector<24x1xf32>
    %cst_29 = arith.constant 3.200000e+01 : f32
    %108 = vector.broadcast %cst_29 : f32 to vector<24x1xf32>
    %109 = arith.divf %107, %108 : vector<24x1xf32>
    %cst_30 = arith.constant 9.99999997E-7 : f32
    %110 = vector.broadcast %cst_30 : f32 to vector<24x1xf32>
    %111 = arith.addf %109, %110 : vector<24x1xf32>
    %112 = math.rsqrt %111 : vector<24x1xf32>
    %113 = vector.broadcast %112 : vector<24x1xf32> to vector<24x32xf32>
    %114 = arith.mulf %104, %113 : vector<24x32xf32>
    %115 = vector.broadcast %0 : vector<1x32xf32> to vector<24x32xf32>
    %116 = arith.mulf %114, %115 : vector<24x32xf32>
    %117 = vector.broadcast %1 : vector<1x32xf32> to vector<24x32xf32>
    %118 = arith.addf %116, %117 : vector<24x32xf32>
    %119 = arith.truncf %118 : vector<24x32xf32> to vector<24x32xbf16>
    %120 = vector.extract_strided_slice %5 {offsets = [0, 224], sizes = [24, 32], strides = [1, 1]} : vector<24x384xf32> to vector<24x32xf32>
    %cst_31 = arith.constant dense<0.000000e+00> : vector<24xf32>
    %121 = vector.multi_reduction <add>, %120, %cst_31 [1] : vector<24x32xf32> to vector<24xf32>
    %122 = vector.shape_cast %121 : vector<24xf32> to vector<24x1xf32>
    %cst_32 = arith.constant 3.200000e+01 : f32
    %123 = vector.broadcast %cst_32 : f32 to vector<24x1xf32>
    %124 = arith.divf %122, %123 : vector<24x1xf32>
    %125 = vector.broadcast %124 : vector<24x1xf32> to vector<24x32xf32>
    %126 = arith.subf %120, %125 : vector<24x32xf32>
    %127 = arith.mulf %126, %126 : vector<24x32xf32>
    %cst_33 = arith.constant dense<0.000000e+00> : vector<24xf32>
    %128 = vector.multi_reduction <add>, %127, %cst_33 [1] : vector<24x32xf32> to vector<24xf32>
    %129 = vector.shape_cast %128 : vector<24xf32> to vector<24x1xf32>
    %cst_34 = arith.constant 3.200000e+01 : f32
    %130 = vector.broadcast %cst_34 : f32 to vector<24x1xf32>
    %131 = arith.divf %129, %130 : vector<24x1xf32>
    %cst_35 = arith.constant 9.99999997E-7 : f32
    %132 = vector.broadcast %cst_35 : f32 to vector<24x1xf32>
    %133 = arith.addf %131, %132 : vector<24x1xf32>
    %134 = math.rsqrt %133 : vector<24x1xf32>
    %135 = vector.broadcast %134 : vector<24x1xf32> to vector<24x32xf32>
    %136 = arith.mulf %126, %135 : vector<24x32xf32>
    %137 = vector.broadcast %2 : vector<1x32xf32> to vector<24x32xf32>
    %138 = arith.mulf %136, %137 : vector<24x32xf32>
    %139 = vector.broadcast %3 : vector<1x32xf32> to vector<24x32xf32>
    %140 = arith.addf %138, %139 : vector<24x32xf32>
    %141 = arith.truncf %140 : vector<24x32xf32> to vector<24x32xbf16>
    %142 = vector.extract_strided_slice %5 {offsets = [0, 256], sizes = [24, 32], strides = [1, 1]} : vector<24x384xf32> to vector<24x32xf32>
    %143 = arith.truncf %142 : vector<24x32xf32> to vector<24x32xbf16>
    %144 = vector.extract_strided_slice %5 {offsets = [0, 288], sizes = [24, 32], strides = [1, 1]} : vector<24x384xf32> to vector<24x32xf32>
    %cst_36 = arith.constant dense<0.000000e+00> : vector<24xf32>
    %145 = vector.multi_reduction <add>, %144, %cst_36 [1] : vector<24x32xf32> to vector<24xf32>
    %146 = vector.shape_cast %145 : vector<24xf32> to vector<24x1xf32>
    %cst_37 = arith.constant 3.200000e+01 : f32
    %147 = vector.broadcast %cst_37 : f32 to vector<24x1xf32>
    %148 = arith.divf %146, %147 : vector<24x1xf32>
    %149 = vector.broadcast %148 : vector<24x1xf32> to vector<24x32xf32>
    %150 = arith.subf %144, %149 : vector<24x32xf32>
    %151 = arith.mulf %150, %150 : vector<24x32xf32>
    %cst_38 = arith.constant dense<0.000000e+00> : vector<24xf32>
    %152 = vector.multi_reduction <add>, %151, %cst_38 [1] : vector<24x32xf32> to vector<24xf32>
    %153 = vector.shape_cast %152 : vector<24xf32> to vector<24x1xf32>
    %cst_39 = arith.constant 3.200000e+01 : f32
    %154 = vector.broadcast %cst_39 : f32 to vector<24x1xf32>
    %155 = arith.divf %153, %154 : vector<24x1xf32>
    %cst_40 = arith.constant 9.99999997E-7 : f32
    %156 = vector.broadcast %cst_40 : f32 to vector<24x1xf32>
    %157 = arith.addf %155, %156 : vector<24x1xf32>
    %158 = math.rsqrt %157 : vector<24x1xf32>
    %159 = vector.broadcast %158 : vector<24x1xf32> to vector<24x32xf32>
    %160 = arith.mulf %150, %159 : vector<24x32xf32>
    %161 = vector.broadcast %0 : vector<1x32xf32> to vector<24x32xf32>
    %162 = arith.mulf %160, %161 : vector<24x32xf32>
    %163 = vector.broadcast %1 : vector<1x32xf32> to vector<24x32xf32>
    %164 = arith.addf %162, %163 : vector<24x32xf32>
    %165 = arith.truncf %164 : vector<24x32xf32> to vector<24x32xbf16>
    %166 = vector.extract_strided_slice %5 {offsets = [0, 320], sizes = [24, 32], strides = [1, 1]} : vector<24x384xf32> to vector<24x32xf32>
    %cst_41 = arith.constant dense<0.000000e+00> : vector<24xf32>
    %167 = vector.multi_reduction <add>, %166, %cst_41 [1] : vector<24x32xf32> to vector<24xf32>
    %168 = vector.shape_cast %167 : vector<24xf32> to vector<24x1xf32>
    %cst_42 = arith.constant 3.200000e+01 : f32
    %169 = vector.broadcast %cst_42 : f32 to vector<24x1xf32>
    %170 = arith.divf %168, %169 : vector<24x1xf32>
    %171 = vector.broadcast %170 : vector<24x1xf32> to vector<24x32xf32>
    %172 = arith.subf %166, %171 : vector<24x32xf32>
    %173 = arith.mulf %172, %172 : vector<24x32xf32>
    %cst_43 = arith.constant dense<0.000000e+00> : vector<24xf32>
    %174 = vector.multi_reduction <add>, %173, %cst_43 [1] : vector<24x32xf32> to vector<24xf32>
    %175 = vector.shape_cast %174 : vector<24xf32> to vector<24x1xf32>
    %cst_44 = arith.constant 3.200000e+01 : f32
    %176 = vector.broadcast %cst_44 : f32 to vector<24x1xf32>
    %177 = arith.divf %175, %176 : vector<24x1xf32>
    %cst_45 = arith.constant 9.99999997E-7 : f32
    %178 = vector.broadcast %cst_45 : f32 to vector<24x1xf32>
    %179 = arith.addf %177, %178 : vector<24x1xf32>
    %180 = math.rsqrt %179 : vector<24x1xf32>
    %181 = vector.broadcast %180 : vector<24x1xf32> to vector<24x32xf32>
    %182 = arith.mulf %172, %181 : vector<24x32xf32>
    %183 = vector.broadcast %2 : vector<1x32xf32> to vector<24x32xf32>
    %184 = arith.mulf %182, %183 : vector<24x32xf32>
    %185 = vector.broadcast %3 : vector<1x32xf32> to vector<24x32xf32>
    %186 = arith.addf %184, %185 : vector<24x32xf32>
    %187 = arith.truncf %186 : vector<24x32xf32> to vector<24x32xbf16>
    %188 = vector.extract_strided_slice %5 {offsets = [0, 352], sizes = [24, 32], strides = [1, 1]} : vector<24x384xf32> to vector<24x32xf32>
    %189 = arith.truncf %188 : vector<24x32xf32> to vector<24x32xbf16>
    %190 = tpu.concatenate %27, %73, %119, %165 in 1 : vector<24x32xbf16>, vector<24x32xbf16>, vector<24x32xbf16>, vector<24x32xbf16> -> vector<24x128xbf16>
    %c0_46 = arith.constant 0 : index
    %c0_47 = arith.constant 0 : index
    %c0_48 = arith.constant 0 : index
    %191 = vector.load %arg4[%c0_46, %c0_47, %c0_48] : memref<1x24x128xbf16, #tpu.memory_space<vmem>>, vector<1x24x128xbf16>
    %192 = vector.shape_cast %191 : vector<1x24x128xbf16> to vector<24x128xbf16>
    %193 = vector.shape_cast %190 : vector<24x128xbf16> to vector<1x24x128xbf16>
    tpu.vector_store %arg4[%c0_46, %c0_47, %c0_48], %193 {strides = array<i32>} : memref<1x24x128xbf16, #tpu.memory_space<vmem>>, vector<1x24x128xbf16>,
    %194 = tpu.concatenate %49, %95, %141, %187 in 1 : vector<24x32xbf16>, vector<24x32xbf16>, vector<24x32xbf16>, vector<24x32xbf16> -> vector<24x128xbf16>
    %c0_49 = arith.constant 0 : index
    %c0_50 = arith.constant 0 : index
    %c0_51 = arith.constant 0 : index
    %195 = vector.load %arg5[%c0_49, %c0_50, %c0_51] : memref<1x24x128xbf16, #tpu.memory_space<vmem>>, vector<1x24x128xbf16>
    %196 = vector.shape_cast %195 : vector<1x24x128xbf16> to vector<24x128xbf16>
    %197 = vector.shape_cast %194 : vector<24x128xbf16> to vector<1x24x128xbf16>
    tpu.vector_store %arg5[%c0_49, %c0_50, %c0_51], %197 {strides = array<i32>} : memref<1x24x128xbf16, #tpu.memory_space<vmem>>, vector<1x24x128xbf16>,
    %198 = tpu.concatenate %51, %97, %143, %189 in 1 : vector<24x32xbf16>, vector<24x32xbf16>, vector<24x32xbf16>, vector<24x32xbf16> -> vector<24x128xbf16>
    %c0_52 = arith.constant 0 : index
    %c0_53 = arith.constant 0 : index
    %c0_54 = arith.constant 0 : index
    %199 = vector.load %arg6[%c0_52, %c0_53, %c0_54] : memref<1x24x128xbf16, #tpu.memory_space<vmem>>, vector<1x24x128xbf16>
    %200 = vector.shape_cast %199 : vector<1x24x128xbf16> to vector<24x128xbf16>
    %201 = vector.shape_cast %198 : vector<24x128xbf16> to vector<1x24x128xbf16>
    tpu.vector_store %arg6[%c0_52, %c0_53, %c0_54], %201 {strides = array<i32>} : memref<1x24x128xbf16, #tpu.memory_space<vmem>>, vector<1x24x128xbf16>,
    return
  }
  func.func @transform_0(%arg0: i32, %arg1: i32) -> (i32, i32, i32) {
    %c0_i32 = arith.constant 0 : i32
    %c0_i32_0 = arith.constant 0 : i32
    return %arg0, %arg1, %c0_i32 : i32, i32, i32
  }
  func.func @transform_1(%arg0: i32, %arg1: i32) -> (i32, i32) {
    %c0_i32 = arith.constant 0 : i32
    %c0_i32_0 = arith.constant 0 : i32
    %c0_i32_1 = arith.constant 0 : i32
    return %c0_i32, %c0_i32_0 : i32, i32
  }
  func.func @transform_2(%arg0: i32, %arg1: i32) -> (i32, i32, i32) {
    %c0_i32 = arith.constant 0 : i32
    %c0_i32_0 = arith.constant 0 : i32
    return %arg0, %arg1, %c0_i32 : i32, i32, i32
  }
  func.func @transform_3(%arg0: i32, %arg1: i32) -> (i32, i32, i32) {
    %c0_i32 = arith.constant 0 : i32
    %c0_i32_0 = arith.constant 0 : i32
    return %arg0, %arg1, %c0_i32 : i32, i32, i32
  }
  func.func @transform_4(%arg0: i32, %arg1: i32) -> (i32, i32, i32) {
    %c0_i32 = arith.constant 0 : i32
    %c0_i32_0 = arith.constant 0 : i32
    return %arg0, %arg1, %c0_i32 : i32, i32, i32
  }
}

</mosaic_0001>

<llo_original>
// kernel: tpu_custom_call.1
$region0: #{tpu_custom_call.1}
  #allocation0 [shape = 'u32[]', space=smem, size = 0x4, offset = 0x4, fixed_abs, tag = 'smem constant byte address 0x4 - core index']
  #allocation1 [shape = 'u32[144,128]{1,0:T(1,128)}', space=vmem, size = 0x12000, scoped, tag = 'internal scratch']
  %s0 = inlined_call_operand.hbm [shape: f32[2,24,384], index: 0, kind: input, shape index: {}]
  %s1 = inlined_call_operand.hbm [shape: f32[4,32], index: 1, kind: input, shape index: {}]
  %s2 = inlined_call_operand.hbm [shape: bf16[2,24,128], index: 2, kind: output, shape index: {0}]
  %s3 = inlined_call_operand.hbm [shape: bf16[2,24,128], index: 3, kind: output, shape index: {1}]
  %s4 = inlined_call_operand.hbm [shape: bf16[2,24,128], index: 4, kind: output, shape index: {2}]
  %5 = xla_tuple %s2, %s3, %s4
  %s6 = sld [smem:[#allocation0]]
  $region65: #{tpu_custom_call.1} parent=0
    _
  %s8 = ssub.s32 1, %s6
  %s9 = scalar_select 0, %s8, %s6
  $region1: #{tpu_custom_call.1} parent=0
    #allocation2 [shape = 'u8[73728]{0}', space=vmem, size = 0x12000, scoped, tag = 'input window, operand 0']
    #allocation3 [shape = 's32[2]{0}', space=sflag, size = 0x8, scoped, tag = 'scoped memory for tpu_custom_call.1']
    #allocation4 [shape = 's32[2]{0}', space=sflag, size = 0x8, scoped, tag = 'scoped memory for tpu_custom_call.1']
    #allocation5 [shape = 'u8[2048]{0}', space=vmem, size = 0x800, scoped, tag = 'input window, operand 1, single buffered']
    #allocation6 [shape = 's32[1]{0}', space=sflag, size = 0x4, scoped, tag = 'scoped memory for tpu_custom_call.1']
    #allocation7 [shape = 'u8[12288]{0}', space=vmem, size = 0x3000, scoped, tag = 'output window, operand 0']
    #allocation8 [shape = 'u8[12288]{0}', space=vmem, size = 0x3000, scoped, tag = 'output window, operand 1']
    #allocation9 [shape = 's32[2]{0}', space=sflag, size = 0x8, scoped, tag = 'scoped memory for tpu_custom_call.1']
    #allocation10 [shape = 'u8[12288]{0}', space=vmem, size = 0x3000, scoped, tag = 'output window, operand 2']
    %10 = vsyncpa [#allocation3], 0
    %s11 = scalar_lea.sflag [#allocation3], 1
    %12 = vsyncpa %s11, 0
    %13 = vsyncpa [#allocation6], 0
    %14 = vsyncpa [#allocation4], 0
    %s15 = scalar_lea.sflag [#allocation4], 1
    %16 = vsyncpa %s15, 0
    %17 = vsyncpa [#allocation9], 0
    %s18 = scalar_lea.sflag [#allocation9], 1
    %19 = vsyncpa %s18, 0
    loop: start=0, step=1, limit=4
    $region2: #{tpu_custom_call.1} parent=1 // loop_pre_header
      _
    $region3: #{tpu_custom_call.1} parent=1 // loop_header
      %s21 = sphi 0, %s25
      %p22 = scmp.ge.s32.totalorder %s21, 4
      %s28 = sphi 0, %s40
      %s29 = sphi 0, %s36
      %s30 = sphi 0, %s28
      %s31 = sphi 0, %s29
      %s32 = sphi 0, %s30
      %s33 = sphi 0, %s31
      %s45 = sphi 0, %s47
      %s48 = sphi 0, %s45
      %s49 = sphi 0, %s48
      %s65 = sphi 0, %s49
      %s69 = sphi 0, %s69
      %s71 = sphi 0, %s69
      %s72 = sphi 0, %s71
      %s86 = sphi 0, %s72
      %s94 = sphi 0, %s96
      %s97 = sphi 0, %s94
      %s98 = sphi 0, %s97
      %s114 = sphi 0, %s98
      %s122 = sphi 0, %s124
      %s125 = sphi 0, %s122
      %s126 = sphi 0, %s125
      %s142 = sphi 0, %s126
      %s150 = sphi 0, %s152
      %s153 = sphi 0, %s150
      %s154 = sphi 0, %s153
      %s170 = sphi 0, %s154
    $region4: #{tpu_custom_call.1} parent=1 // loop_header_branch
      %24 = sbr.rel (%p22) target = $region8
    $region5: #{tpu_custom_call.1} parent=1 // loop_body
      %s26 = ssub.s32 %s21, 1
      %s27 = ssub.s32 %s21, 2
      %s34 = sadd.s32 1, %s29
      %p35 = scmp.ge.s32.totalorder %s34, 1
      %s36 = scalar_select %p35, 0, %s34
      %s37 = sadd.s32 1, %s28
      %s38 = scalar_select %p35, %s37, %s28
      %p39 = scmp.ge.s32.totalorder %s38, 2
      %s40 = scalar_select %p39, 0, %s38
      %s41 = ssub.s32 %s28, %s40
      %s42 = ssub.s32 %s29, %s36
      %s43 = sor.u32 %s41, %s42
      %p44 = scmp.eq.s32.totalorder %s43, 0
      %s46 = sadd.s32 %s45, 1
      %s47 = scalar_select %p44, %s45, %s46
      %p50 = pneg %p44
      %p51 = scmp.eq.s32.totalorder %s21, 1
      %p52 = por %p50, %p51
      %p53 = scmp.ne.s32.totalorder %s45, %s48
      %p54 = scmp.eq.s32.totalorder %s21, 0
      %p55 = por %p53, %p54
      %p56 = scmp.ne.s32.totalorder %s45, %s48
      %p57 = scmp.eq.s32.totalorder %s26, 1
      %p58 = por %p56, %p57
      %p59 = scmp.ne.s32.totalorder %s48, %s49
      %p60 = scmp.eq.s32.totalorder %s26, 0
      %p61 = por %p59, %p60
      %p62 = scmp.ne.s32.totalorder %s48, %s49
      %p63 = scmp.eq.s32.totalorder %s27, 1
      %p64 = por %p62, %p63
      %p66 = scmp.ne.s32.totalorder %s49, %s65
      %p67 = scmp.eq.s32.totalorder %s27, 0
      %p68 = por %p66, %p67
      %s70 = sadd.s32 %s69, 1
      %p73 = scmp.eq.s32.totalorder %s21, 1
      %p74 = scmp.ne.s32.totalorder %s69, %s71
      %p75 = scmp.eq.s32.totalorder %s21, 0
      %p76 = por %p74, %p75
      %p77 = scmp.ne.s32.totalorder %s69, %s71
      %p78 = scmp.eq.s32.totalorder %s26, 1
      %p79 = por %p77, %p78
      %p80 = scmp.ne.s32.totalorder %s71, %s72
      %p81 = scmp.eq.s32.totalorder %s26, 0
      %p82 = por %p80, %p81
      %p83 = scmp.ne.s32.totalorder %s71, %s72
      %p84 = scmp.eq.s32.totalorder %s27, 1
      %p85 = por %p83, %p84
      %p87 = scmp.ne.s32.totalorder %s72, %s86
      %p88 = scmp.eq.s32.totalorder %s27, 0
      %p89 = por %p87, %p88
      %s90 = ssub.s32 %s28, %s40
      %s91 = ssub.s32 %s29, %s36
      %s92 = sor.u32 %s90, %s91
      %p93 = scmp.eq.s32.totalorder %s92, 0
      %s95 = sadd.s32 %s94, 1
      %s96 = scalar_select %p93, %s94, %s95
      %p99 = pneg %p93
      %p100 = scmp.eq.s32.totalorder %s21, 1
      %p101 = por %p99, %p100
      %p102 = scmp.ne.s32.totalorder %s94, %s97
      %p103 = scmp.eq.s32.totalorder %s21, 0
      %p104 = por %p102, %p103
      %p105 = scmp.ne.s32.totalorder %s94, %s97
      %p106 = scmp.eq.s32.totalorder %s26, 1
      %p107 = por %p105, %p106
      %p108 = scmp.ne.s32.totalorder %s97, %s98
      %p109 = scmp.eq.s32.totalorder %s26, 0
      %p110 = por %p108, %p109
      %p111 = scmp.ne.s32.totalorder %s97, %s98
      %p112 = scmp.eq.s32.totalorder %s27, 1
      %p113 = por %p111, %p112
      %p115 = scmp.ne.s32.totalorder %s98, %s114
      %p116 = scmp.eq.s32.totalorder %s27, 0
      %p117 = por %p115, %p116
      %s118 = ssub.s32 %s28, %s40
      %s119 = ssub.s32 %s29, %s36
      %s120 = sor.u32 %s118, %s119
      %p121 = scmp.eq.s32.totalorder %s120, 0
      %s123 = sadd.s32 %s122, 1
      %s124 = scalar_select %p121, %s122, %s123
      %p127 = pneg %p121
      %p128 = scmp.eq.s32.totalorder %s21, 1
      %p129 = por %p127, %p128
      %p130 = scmp.ne.s32.totalorder %s122, %s125
      %p131 = scmp.eq.s32.totalorder %s21, 0
      %p132 = por %p130, %p131
      %p133 = scmp.ne.s32.totalorder %s122, %s125
      %p134 = scmp.eq.s32.totalorder %s26, 1
      %p135 = por %p133, %p134
      %p136 = scmp.ne.s32.totalorder %s125, %s126
      %p137 = scmp.eq.s32.totalorder %s26, 0
      %p138 = por %p136, %p137
      %p139 = scmp.ne.s32.totalorder %s125, %s126
      %p140 = scmp.eq.s32.totalorder %s27, 1
      %p141 = por %p139, %p140
      %p143 = scmp.ne.s32.totalorder %s126, %s142
      %p144 = scmp.eq.s32.totalorder %s27, 0
      %p145 = por %p143, %p144
      %s146 = ssub.s32 %s28, %s40
      %s147 = ssub.s32 %s29, %s36
      %s148 = sor.u32 %s146, %s147
      %p149 = scmp.eq.s32.totalorder %s148, 0
      %s151 = sadd.s32 %s150, 1
      %s152 = scalar_select %p149, %s150, %s151
      %p155 = pneg %p149
      %p156 = scmp.eq.s32.totalorder %s21, 1
      %p157 = por %p155, %p156
      %p158 = scmp.ne.s32.totalorder %s150, %s153
      %p159 = scmp.eq.s32.totalorder %s21, 0
      %p160 = por %p158, %p159
      %p161 = scmp.ne.s32.totalorder %s150, %s153
      %p162 = scmp.eq.s32.totalorder %s26, 1
      %p163 = por %p161, %p162
      %p164 = scmp.ne.s32.totalorder %s153, %s154
      %p165 = scmp.eq.s32.totalorder %s26, 0
      %p166 = por %p164, %p165
      %p167 = scmp.ne.s32.totalorder %s153, %s154
      %p168 = scmp.eq.s32.totalorder %s27, 1
      %p169 = por %p167, %p168
      %p171 = scmp.ne.s32.totalorder %s154, %s170
      %p172 = scmp.eq.s32.totalorder %s27, 0
      %p173 = por %p171, %p172
      %p174 = scmp.le.s32.totalorder 1, %s21
      %p175 = scmp.lt.s32.totalorder %s21, 3
      %p176 = pnand %p174, %p175
      %p177 = pneg %p176
      // Predicated region
      $region9: #{tpu_custom_call.1} parent=5 // pred_check
        _
      $region10: #{tpu_custom_call.1} parent=5 // pred_check_branch
        %179 = sbr.rel (%p176) target = $region12
      $region11: #{tpu_custom_call.1} parent=5 // pred_region
        %s180 = ssub.s32 %s21, 1
        // Predicated region
        $region13: #{tpu_custom_call.1} parent=11 // pred_check
          %p181 = pneg %p82
        $region14: #{tpu_custom_call.1} parent=11 // pred_check_branch
          %183 = sbr.rel (%p181) target = $region16
        $region15: #{tpu_custom_call.1} parent=11 // pred_region
          %s185 = ssub.s32 64, 64
          %186 = vsyncadd [#allocation6], %s185
          %s188 = sshll.u32 [#allocation5], 4
          %s189 = int_to_ptr.vmem [resolvable:$true] %s188
          %191 = dma.hbm_to_vmem [thread:$0]  %s1, 64, %s189, [#allocation6]
        $region16: #{tpu_custom_call.1} parent=11 // pred_fallthru
          _
      $region12: #{tpu_custom_call.1} parent=5 // pred_fallthru
        _
      %p192 = scmp.lt.s32.totalorder %s21, 2
      // Predicated region
      $region17: #{tpu_custom_call.1} parent=5 // pred_check
        %p193 = pneg %p192
      $region18: #{tpu_custom_call.1} parent=5 // pred_check_branch
        %195 = sbr.rel (%p193) target = $region20
      $region19: #{tpu_custom_call.1} parent=5 // pred_region
        // Predicated region
        $region21: #{tpu_custom_call.1} parent=19 // pred_check
          %p196 = pneg %p55
        $region22: #{tpu_custom_call.1} parent=19 // pred_check_branch
          %198 = sbr.rel (%p196) target = $region24
        $region23: #{tpu_custom_call.1} parent=19 // pred_region
          %s199 = sand.u32 %s45, 1
          %s200 = scalar_lea.sflag [#allocation3], %s199
          %s201 = sand.u32 %s45, 1
          %s202 = smul.addr %s201, 72
          %s203 = scalar_lea.vmem [#allocation2], %s202
          %s204 = smul.u32 3, %s29
          %s206 = ssub.s32 1152, 1152
          %207 = vsyncadd %s200, %s206
          %s208 = smul.addr %s204, 3
          %s209 = smul.addr %s28, 9
          %s210 = sadd.s32 %s208, %s209
          %s211 = smul.addr %s210, 128
          %s212 = scalar_lea.hbm %s0, %s211
          %s213 = sshll.u32 %s203, 4
          %s214 = int_to_ptr.vmem [resolvable:$true] %s213
          %219 = dma.hbm_to_vmem [thread:$0]  %s212, 1152, %s214, %s200, 384, 384, 24
        $region24: #{tpu_custom_call.1} parent=19 // pred_fallthru
          _
      $region20: #{tpu_custom_call.1} parent=5 // pred_fallthru
        _
      %p220 = scmp.le.s32.totalorder 1, %s21
      %p221 = scmp.lt.s32.totalorder %s21, 3
      %p222 = pnand %p220, %p221
      %p223 = pneg %p222
      // Predicated region
      $region25: #{tpu_custom_call.1} parent=5 // pred_check
        _
      $region26: #{tpu_custom_call.1} parent=5 // pred_check_branch
        %225 = sbr.rel (%p222) target = $region28
      $region27: #{tpu_custom_call.1} parent=5 // pred_region
        %s226 = ssub.s32 %s21, 1
        %s227 = sand.u32 %s48, 1
        %s228 = scalar_lea.sflag [#allocation3], %s227
        %s229 = sand.u32 %s48, 1
        %s230 = smul.addr %s229, 72
        %s231 = scalar_lea.vmem [#allocation2], %s230
        // Predicated region
        $region29: #{tpu_custom_call.1} parent=27 // pred_check
          %p232 = pneg %p61
        $region30: #{tpu_custom_call.1} parent=27 // pred_check_branch
          %234 = sbr.rel (%p232) target = $region32
        $region31: #{tpu_custom_call.1} parent=27 // pred_region
          %235 = dma.done %s228, 1152
        $region32: #{tpu_custom_call.1} parent=27 // pred_fallthru
          _
        // Predicated region
        $region33: #{tpu_custom_call.1} parent=27 // pred_check
          %p236 = pneg %p82
        $region34: #{tpu_custom_call.1} parent=27 // pred_check_branch
          %238 = sbr.rel (%p236) target = $region36
        $region35: #{tpu_custom_call.1} parent=27 // pred_region
          %239 = dma.done [#allocation6], 64
        $region36: #{tpu_custom_call.1} parent=27 // pred_fallthru
          _
        %s240 = sand.u32 %s48, 1
        %s241 = scalar_lea.sflag [#allocation3], %s240
        %s242 = sand.u32 %s48, 1
        %s243 = smul.addr %s242, 72
        %s244 = scalar_lea.vmem [#allocation2], %s243
        %p245 = pneg %p61
        %p246 = pneg %p58
        %p247 = pneg %p82
        %p248 = pneg %p79
        %p249 = pneg %p110
        %p250 = pneg %p107
        %s251 = sand.u32 %s97, 1
        %s252 = scalar_lea.sflag [#allocation4], %s251
        %s253 = sand.u32 %s97, 1
        %s254 = smul.addr %s253, 12
        %s255 = scalar_lea.vmem [#allocation7], %s254
        %p256 = pneg %p138
        %p257 = pneg %p135
        %s258 = sand.u32 %s26, 1
        %s259 = scalar_lea.sflag [#allocation9], %s258
        %s260 = sand.u32 %s125, 1
        %s261 = smul.addr %s260, 12
        %s262 = scalar_lea.vmem [#allocation8], %s261
        %p263 = pneg %p166
        %p264 = pneg %p163
        %s265 = sand.u32 %s26, 1
        %s266 = scalar_lea.sflag [#allocation9], %s265
        %s267 = sand.u32 %s153, 1
        %s268 = smul.addr %s267, 12
        %s269 = scalar_lea.vmem [#allocation10], %s268
        %s270 = smul.u32 3, %s31
        %s271 = smul.u32 3, %s31
        %s272 = smul.u32 3, %s31
        %s273 = smul.u32 3, %s31
        %v274 = vld [vmem:[#allocation5] sm:$0x1]
        %v275 = vld [vmem:[#allocation5 + $0x1] sm:$0x1]
        %v276 = vld [vmem:[#allocation5 + $0x2] sm:$0x1]
        %v277 = vld [vmem:[#allocation5 + $0x3] sm:$0x1]
        %v278 = vld [vmem:[%s231] sm:$0xff]
        %v279 = vld [vmem:[%s231 + $0x8] sm:$0xff]
        %v280 = vld [vmem:[%s231 + $0x10] sm:$0xff]
        %v281 = vld [vmem:[%s231 + $0x18] sm:$0xff]
        %v282 = vld [vmem:[%s231 + $0x20] sm:$0xff]
        %v283 = vld [vmem:[%s231 + $0x28] sm:$0xff]
        %v284 = vld [vmem:[%s231 + $0x30] sm:$0xff]
        %v285 = vld [vmem:[%s231 + $0x38] sm:$0xff]
        %v286 = vld [vmem:[%s231 + $0x40] sm:$0xff]
        %vm287 = vcmask 261120
        %v288 = vsel %vm287, %v278, 0.0
        %289 = vadd.xlane.f32.xlu0 %v288
        %v290 = vpop.xlane.xlu0 %289
        %v291 = vsel %vm287, %v281, 0.0
        %292 = vadd.xlane.f32.xlu0 %v291
        %v293 = vpop.xlane.xlu0 %292
        %v294 = vsel %vm287, %v284, 0.0
        %295 = vadd.xlane.f32.xlu0 %v294
        %v296 = vpop.xlane.xlu0 %295
        %v297 = vrcp.pop 32.0
        %v298 = vmul.f32 %v290, %v297
        %v299 = vmul.f32 %v293, %v297
        %v300 = vmul.f32 %v296, %v297
        %v301 = vsub.f32 %v278, %v298
        %v302 = vsub.f32 %v281, %v299
        %v303 = vsub.f32 %v284, %v300
        %v304 = vmul.f32 %v301, %v301
        %v305 = vmul.f32 %v302, %v302
        %v306 = vmul.f32 %v303, %v303
        %v307 = vsel %vm287, %v304, 0.0
        %308 = vadd.xlane.f32.xlu0 %v307
        %v309 = vpop.xlane.xlu0 %308
        %v310 = vsel %vm287, %v305, 0.0
        %311 = vadd.xlane.f32.xlu0 %v310
        %v312 = vpop.xlane.xlu0 %311
        %v313 = vsel %vm287, %v306, 0.0
        %314 = vadd.xlane.f32.xlu0 %v313
        %v315 = vpop.xlane.xlu0 %314
        %v316 = vmul.f32 %v309, %v297
        %v317 = vmul.f32 %v312, %v297
        %v318 = vmul.f32 %v315, %v297
        %v319 = vadd.f32 %v316, 1e-06
        %v320 = vadd.f32 %v317, 1e-06
        %v321 = vadd.f32 %v318, 1e-06
        %v322 = vrsqrt.pop %v319
        %v323 = vrsqrt.pop %v320
        %v324 = vrsqrt.pop %v321
        %v325 = vmul.f32 %v301, %v322
        %v326 = vmul.f32 %v302, %v323
        %v327 = vmul.f32 %v303, %v324
        %v328 = vlaneseq
        %v329 = vshrl.u32 %v328, 7
        %v330 = vsub.s32 0, %v329
        %v331 = vrot.slane %v274, %v330
        %v332 = vmul.f32 %v325, %v331
        %v333 = vmul.f32 %v326, %v331
        %v334 = vmul.f32 %v327, %v331
        %v335 = vlaneseq
        %v336 = vshrl.u32 %v335, 7
        %v337 = vsub.s32 0, %v336
        %v338 = vrot.slane %v275, %v337
        %v339 = vadd.f32 %v332, %v338
        %v340 = vadd.f32 %v333, %v338
        %v341 = vadd.f32 %v334, %v338
        %v342 = vpack.c.bf16 %v340, %v339
        %v343 = vpack.c.bf16 %v341, %v341
        %347 = vrot.lane.b32.xlu0 %v278, 96
        %v348 = vpop.permute.xlu0 %347
        %349 = vrot.lane.b32.xlu0 %v281, 96
        %v350 = vpop.permute.xlu0 %349
        %351 = vrot.lane.b32.xlu0 %v284, 96
        %v352 = vpop.permute.xlu0 %351
        %v356 = vsel %vm287, %v348, 0.0
        %357 = vadd.xlane.f32.xlu0 %v356
        %v358 = vpop.xlane.xlu0 %357
        %v359 = vsel %vm287, %v350, 0.0
        %360 = vadd.xlane.f32.xlu0 %v359
        %v361 = vpop.xlane.xlu0 %360
        %v362 = vsel %vm287, %v352, 0.0
        %363 = vadd.xlane.f32.xlu0 %v362
        %v364 = vpop.xlane.xlu0 %363
        %v365 = vmul.f32 %v358, %v297
        %v366 = vmul.f32 %v361, %v297
        %v367 = vmul.f32 %v364, %v297
        %v368 = vsub.f32 %v278, %v365
        %v369 = vsub.f32 %v281, %v366
        %v370 = vsub.f32 %v284, %v367
        %v371 = vmul.f32 %v368, %v368
        %v372 = vmul.f32 %v369, %v369
        %v373 = vmul.f32 %v370, %v370
        %377 = vrot.lane.b32.xlu0 %v371, 96
        %v378 = vpop.permute.xlu0 %377
        %379 = vrot.lane.b32.xlu0 %v372, 96
        %v380 = vpop.permute.xlu0 %379
        %381 = vrot.lane.b32.xlu0 %v373, 96
        %v382 = vpop.permute.xlu0 %381
        %v386 = vsel %vm287, %v378, 0.0
        %387 = vadd.xlane.f32.xlu0 %v386
        %v388 = vpop.xlane.xlu0 %387
        %v389 = vsel %vm287, %v380, 0.0
        %390 = vadd.xlane.f32.xlu0 %v389
        %v391 = vpop.xlane.xlu0 %390
        %v392 = vsel %vm287, %v382, 0.0
        %393 = vadd.xlane.f32.xlu0 %v392
        %v394 = vpop.xlane.xlu0 %393
        %v395 = vmul.f32 %v388, %v297
        %v396 = vmul.f32 %v391, %v297
        %v397 = vmul.f32 %v394, %v297
        %v398 = vadd.f32 %v395, 1e-06
        %v399 = vadd.f32 %v396, 1e-06
        %v400 = vadd.f32 %v397, 1e-06
        %v401 = vrsqrt.pop %v398
        %v402 = vrsqrt.pop %v399
        %v403 = vrsqrt.pop %v400
        %v404 = vmul.f32 %v368, %v401
        %v405 = vmul.f32 %v369, %v402
        %v406 = vmul.f32 %v370, %v403
        %v407 = vlaneseq
        %v408 = vshrl.u32 %v407, 7
        %v409 = vsub.s32 0, %v408
        %v410 = vrot.slane %v276, %v409
        %412 = vrot.lane.b32.xlu0 %v410, 32
        %v413 = vpop.permute.xlu0 %412
        %v415 = vmul.f32 %v404, %v413
        %v416 = vmul.f32 %v405, %v413
        %v417 = vmul.f32 %v406, %v413
        %v418 = vlaneseq
        %v419 = vshrl.u32 %v418, 7
        %v420 = vsub.s32 0, %v419
        %v421 = vrot.slane %v277, %v420
        %423 = vrot.lane.b32.xlu0 %v421, 32
        %v424 = vpop.permute.xlu0 %423
        %v426 = vadd.f32 %v415, %v424
        %v427 = vadd.f32 %v416, %v424
        %v428 = vadd.f32 %v417, %v424
        %v429 = vpack.c.bf16 %v427, %v426
        %v430 = vpack.c.bf16 %v428, %v428
        %v431 = vpack.c.bf16 %v281, %v278
        %v432 = vpack.c.bf16 %v284, %v284
        %433 = vrot.lane.b32.xlu0 %v278, 32
        %v434 = vpop.permute.xlu0 %433
        %435 = vrot.lane.b32.xlu0 %v281, 32
        %v436 = vpop.permute.xlu0 %435
        %437 = vrot.lane.b32.xlu0 %v284, 32
        %v438 = vpop.permute.xlu0 %437
        %v442 = vsel %vm287, %v434, 0.0
        %443 = vadd.xlane.f32.xlu0 %v442
        %v444 = vpop.xlane.xlu0 %443
        %v445 = vsel %vm287, %v436, 0.0
        %446 = vadd.xlane.f32.xlu0 %v445
        %v447 = vpop.xlane.xlu0 %446
        %v448 = vsel %vm287, %v438, 0.0
        %449 = vadd.xlane.f32.xlu0 %v448
        %v450 = vpop.xlane.xlu0 %449
        %v451 = vmul.f32 %v444, %v297
        %v452 = vmul.f32 %v447, %v297
        %v453 = vmul.f32 %v450, %v297
        %v454 = vsub.f32 %v278, %v451
        %v455 = vsub.f32 %v281, %v452
        %v456 = vsub.f32 %v284, %v453
        %v457 = vmul.f32 %v454, %v454
        %v458 = vmul.f32 %v455, %v455
        %v459 = vmul.f32 %v456, %v456
        %463 = vrot.lane.b32.xlu0 %v457, 32
        %v464 = vpop.permute.xlu0 %463
        %465 = vrot.lane.b32.xlu0 %v458, 32
        %v466 = vpop.permute.xlu0 %465
        %467 = vrot.lane.b32.xlu0 %v459, 32
        %v468 = vpop.permute.xlu0 %467
        %v472 = vsel %vm287, %v464, 0.0
        %473 = vadd.xlane.f32.xlu0 %v472
        %v474 = vpop.xlane.xlu0 %473
        %v475 = vsel %vm287, %v466, 0.0
        %476 = vadd.xlane.f32.xlu0 %v475
        %v477 = vpop.xlane.xlu0 %476
        %v478 = vsel %vm287, %v468, 0.0
        %479 = vadd.xlane.f32.xlu0 %v478
        %v480 = vpop.xlane.xlu0 %479
        %v481 = vmul.f32 %v474, %v297
        %v482 = vmul.f32 %v477, %v297
        %v483 = vmul.f32 %v480, %v297
        %v484 = vadd.f32 %v481, 1e-06
        %v485 = vadd.f32 %v482, 1e-06
        %v486 = vadd.f32 %v483, 1e-06
        %v487 = vrsqrt.pop %v484
        %v488 = vrsqrt.pop %v485
        %v489 = vrsqrt.pop %v486
        %v490 = vmul.f32 %v454, %v487
        %v491 = vmul.f32 %v455, %v488
        %v492 = vmul.f32 %v456, %v489
        %494 = vrot.lane.b32.xlu0 %v331, 96
        %v495 = vpop.permute.xlu0 %494
        %v497 = vmul.f32 %v490, %v495
        %v498 = vmul.f32 %v491, %v495
        %v499 = vmul.f32 %v492, %v495
        %501 = vrot.lane.b32.xlu0 %v338, 96
        %v502 = vpop.permute.xlu0 %501
        %v504 = vadd.f32 %v497, %v502
        %v505 = vadd.f32 %v498, %v502
        %v506 = vadd.f32 %v499, %v502
        %v507 = vpack.c.bf16 %v505, %v504
        %v508 = vpack.c.bf16 %v506, %v506
        %v509 = vsel %vm287, %v279, 0.0
        %510 = vadd.xlane.f32.xlu0 %v509
        %v511 = vpop.xlane.xlu0 %510
        %v512 = vsel %vm287, %v282, 0.0
        %513 = vadd.xlane.f32.xlu0 %v512
        %v514 = vpop.xlane.xlu0 %513
        %v515 = vsel %vm287, %v285, 0.0
        %516 = vadd.xlane.f32.xlu0 %v515
        %v517 = vpop.xlane.xlu0 %516
        %v518 = vmul.f32 %v511, %v297
        %v519 = vmul.f32 %v514, %v297
        %v520 = vmul.f32 %v517, %v297
        %v521 = vsub.f32 %v279, %v518
        %v522 = vsub.f32 %v282, %v519
        %v523 = vsub.f32 %v285, %v520
        %v524 = vmul.f32 %v521, %v521
        %v525 = vmul.f32 %v522, %v522
        %v526 = vmul.f32 %v523, %v523
        %v527 = vsel %vm287, %v524, 0.0
        %528 = vadd.xlane.f32.xlu0 %v527
        %v529 = vpop.xlane.xlu0 %528
        %v530 = vsel %vm287, %v525, 0.0
        %531 = vadd.xlane.f32.xlu0 %v530
        %v532 = vpop.xlane.xlu0 %531
        %v533 = vsel %vm287, %v526, 0.0
        %534 = vadd.xlane.f32.xlu0 %v533
        %v535 = vpop.xlane.xlu0 %534
        %v536 = vmul.f32 %v529, %v297
        %v537 = vmul.f32 %v532, %v297
        %v538 = vmul.f32 %v535, %v297
        %v539 = vadd.f32 %v536, 1e-06
        %v540 = vadd.f32 %v537, 1e-06
        %v541 = vadd.f32 %v538, 1e-06
        %v542 = vrsqrt.pop %v539
        %v543 = vrsqrt.pop %v540
        %v544 = vrsqrt.pop %v541
        %v545 = vmul.f32 %v521, %v542
        %v546 = vmul.f32 %v522, %v543
        %v547 = vmul.f32 %v523, %v544
        %v548 = vmul.f32 %v545, %v410
        %v549 = vmul.f32 %v546, %v410
        %v550 = vmul.f32 %v547, %v410
        %v551 = vadd.f32 %v548, %v421
        %v552 = vadd.f32 %v549, %v421
        %v553 = vadd.f32 %v550, %v421
        %v554 = vpack.c.bf16 %v552, %v551
        %v555 = vpack.c.bf16 %v553, %v553
        %v556 = vpack.c.bf16 %v282, %v279
        %v557 = vpack.c.bf16 %v285, %v285
        %561 = vrot.lane.b32.xlu0 %v279, 64
        %v562 = vpop.permute.xlu0 %561
        %563 = vrot.lane.b32.xlu0 %v282, 64
        %v564 = vpop.permute.xlu0 %563
        %565 = vrot.lane.b32.xlu0 %v285, 64
        %v566 = vpop.permute.xlu0 %565
        %v570 = vsel %vm287, %v562, 0.0
        %571 = vadd.xlane.f32.xlu0 %v570
        %v572 = vpop.xlane.xlu0 %571
        %v573 = vsel %vm287, %v564, 0.0
        %574 = vadd.xlane.f32.xlu0 %v573
        %v575 = vpop.xlane.xlu0 %574
        %v576 = vsel %vm287, %v566, 0.0
        %577 = vadd.xlane.f32.xlu0 %v576
        %v578 = vpop.xlane.xlu0 %577
        %v579 = vmul.f32 %v572, %v297
        %v580 = vmul.f32 %v575, %v297
        %v581 = vmul.f32 %v578, %v297
        %v582 = vsub.f32 %v279, %v579
        %v583 = vsub.f32 %v282, %v580
        %v584 = vsub.f32 %v285, %v581
        %v585 = vmul.f32 %v582, %v582
        %v586 = vmul.f32 %v583, %v583
        %v587 = vmul.f32 %v584, %v584
        %591 = vrot.lane.b32.xlu0 %v585, 64
        %v592 = vpop.permute.xlu0 %591
        %593 = vrot.lane.b32.xlu0 %v586, 64
        %v594 = vpop.permute.xlu0 %593
        %595 = vrot.lane.b32.xlu0 %v587, 64
        %v596 = vpop.permute.xlu0 %595
        %v600 = vsel %vm287, %v592, 0.0
        %601 = vadd.xlane.f32.xlu0 %v600
        %v602 = vpop.xlane.xlu0 %601
        %v603 = vsel %vm287, %v594, 0.0
        %604 = vadd.xlane.f32.xlu0 %v603
        %v605 = vpop.xlane.xlu0 %604
        %v606 = vsel %vm287, %v596, 0.0
        %607 = vadd.xlane.f32.xlu0 %v606
        %v608 = vpop.xlane.xlu0 %607
        %v609 = vmul.f32 %v602, %v297
        %v610 = vmul.f32 %v605, %v297
        %v611 = vmul.f32 %v608, %v297
        %v612 = vadd.f32 %v609, 1e-06
        %v613 = vadd.f32 %v610, 1e-06
        %v614 = vadd.f32 %v611, 1e-06
        %v615 = vrsqrt.pop %v612
        %v616 = vrsqrt.pop %v613
        %v617 = vrsqrt.pop %v614
        %v618 = vmul.f32 %v582, %v615
        %v619 = vmul.f32 %v583, %v616
        %v620 = vmul.f32 %v584, %v617
        %621 = vrot.lane.b32.xlu0 %v331, 64
        %v622 = vpop.permute.xlu0 %621
        %v624 = vmul.f32 %v618, %v622
        %v625 = vmul.f32 %v619, %v622
        %v626 = vmul.f32 %v620, %v622
        %627 = vrot.lane.b32.xlu0 %v338, 64
        %v628 = vpop.permute.xlu0 %627
        %v630 = vadd.f32 %v624, %v628
        %v631 = vadd.f32 %v625, %v628
        %v632 = vadd.f32 %v626, %v628
        %v633 = vpack.c.bf16 %v631, %v630
        %v634 = vpack.c.bf16 %v632, %v632
        %635 = vrot.lane.b32.xlu0 %v279, 32
        %v636 = vpop.permute.xlu0 %635
        %637 = vrot.lane.b32.xlu0 %v282, 32
        %v638 = vpop.permute.xlu0 %637
        %639 = vrot.lane.b32.xlu0 %v285, 32
        %v640 = vpop.permute.xlu0 %639
        %v644 = vsel %vm287, %v636, 0.0
        %645 = vadd.xlane.f32.xlu0 %v644
        %v646 = vpop.xlane.xlu0 %645
        %v647 = vsel %vm287, %v638, 0.0
        %648 = vadd.xlane.f32.xlu0 %v647
        %v649 = vpop.xlane.xlu0 %648
        %v650 = vsel %vm287, %v640, 0.0
        %651 = vadd.xlane.f32.xlu0 %v650
        %v652 = vpop.xlane.xlu0 %651
        %v653 = vmul.f32 %v646, %v297
        %v654 = vmul.f32 %v649, %v297
        %v655 = vmul.f32 %v652, %v297
        %v656 = vsub.f32 %v279, %v653
        %v657 = vsub.f32 %v282, %v654
        %v658 = vsub.f32 %v285, %v655
        %v659 = vmul.f32 %v656, %v656
        %v660 = vmul.f32 %v657, %v657
        %v661 = vmul.f32 %v658, %v658
        %665 = vrot.lane.b32.xlu0 %v659, 32
        %v666 = vpop.permute.xlu0 %665
        %667 = vrot.lane.b32.xlu0 %v660, 32
        %v668 = vpop.permute.xlu0 %667
        %669 = vrot.lane.b32.xlu0 %v661, 32
        %v670 = vpop.permute.xlu0 %669
        %v674 = vsel %vm287, %v666, 0.0
        %675 = vadd.xlane.f32.xlu0 %v674
        %v676 = vpop.xlane.xlu0 %675
        %v677 = vsel %vm287, %v668, 0.0
        %678 = vadd.xlane.f32.xlu0 %v677
        %v679 = vpop.xlane.xlu0 %678
        %v680 = vsel %vm287, %v670, 0.0
        %681 = vadd.xlane.f32.xlu0 %v680
        %v682 = vpop.xlane.xlu0 %681
        %v683 = vmul.f32 %v676, %v297
        %v684 = vmul.f32 %v679, %v297
        %v685 = vmul.f32 %v682, %v297
        %v686 = vadd.f32 %v683, 1e-06
        %v687 = vadd.f32 %v684, 1e-06
        %v688 = vadd.f32 %v685, 1e-06
        %v689 = vrsqrt.pop %v686
        %v690 = vrsqrt.pop %v687
        %v691 = vrsqrt.pop %v688
        %v692 = vmul.f32 %v656, %v689
        %v693 = vmul.f32 %v657, %v690
        %v694 = vmul.f32 %v658, %v691
        %695 = vrot.lane.b32.xlu0 %v410, 96
        %v696 = vpop.permute.xlu0 %695
        %v698 = vmul.f32 %v692, %v696
        %v699 = vmul.f32 %v693, %v696
        %v700 = vmul.f32 %v694, %v696
        %701 = vrot.lane.b32.xlu0 %v421, 96
        %v702 = vpop.permute.xlu0 %701
        %v704 = vadd.f32 %v698, %v702
        %v705 = vadd.f32 %v699, %v702
        %v706 = vadd.f32 %v700, %v702
        %v707 = vpack.c.bf16 %v705, %v704
        %v708 = vpack.c.bf16 %v706, %v706
        %v709 = vpack.c.bf16 %v283, %v280
        %v710 = vpack.c.bf16 %v286, %v286
        %714 = vrot.lane.b32.xlu0 %v280, 96
        %v715 = vpop.permute.xlu0 %714
        %716 = vrot.lane.b32.xlu0 %v283, 96
        %v717 = vpop.permute.xlu0 %716
        %718 = vrot.lane.b32.xlu0 %v286, 96
        %v719 = vpop.permute.xlu0 %718
        %v723 = vsel %vm287, %v715, 0.0
        %724 = vadd.xlane.f32.xlu0 %v723
        %v725 = vpop.xlane.xlu0 %724
        %v726 = vsel %vm287, %v717, 0.0
        %727 = vadd.xlane.f32.xlu0 %v726
        %v728 = vpop.xlane.xlu0 %727
        %v729 = vsel %vm287, %v719, 0.0
        %730 = vadd.xlane.f32.xlu0 %v729
        %v731 = vpop.xlane.xlu0 %730
        %v732 = vmul.f32 %v725, %v297
        %v733 = vmul.f32 %v728, %v297
        %v734 = vmul.f32 %v731, %v297
        %v735 = vsub.f32 %v280, %v732
        %v736 = vsub.f32 %v283, %v733
        %v737 = vsub.f32 %v286, %v734
        %v738 = vmul.f32 %v735, %v735
        %v739 = vmul.f32 %v736, %v736
        %v740 = vmul.f32 %v737, %v737
        %744 = vrot.lane.b32.xlu0 %v738, 96
        %v745 = vpop.permute.xlu0 %744
        %746 = vrot.lane.b32.xlu0 %v739, 96
        %v747 = vpop.permute.xlu0 %746
        %748 = vrot.lane.b32.xlu0 %v740, 96
        %v749 = vpop.permute.xlu0 %748
        %v753 = vsel %vm287, %v745, 0.0
        %754 = vadd.xlane.f32.xlu0 %v753
        %v755 = vpop.xlane.xlu0 %754
        %v756 = vsel %vm287, %v747, 0.0
        %757 = vadd.xlane.f32.xlu0 %v756
        %v758 = vpop.xlane.xlu0 %757
        %v759 = vsel %vm287, %v749, 0.0
        %760 = vadd.xlane.f32.xlu0 %v759
        %v761 = vpop.xlane.xlu0 %760
        %v762 = vmul.f32 %v755, %v297
        %v763 = vmul.f32 %v758, %v297
        %v764 = vmul.f32 %v761, %v297
        %v765 = vadd.f32 %v762, 1e-06
        %v766 = vadd.f32 %v763, 1e-06
        %v767 = vadd.f32 %v764, 1e-06
        %v768 = vrsqrt.pop %v765
        %v769 = vrsqrt.pop %v766
        %v770 = vrsqrt.pop %v767
        %v771 = vmul.f32 %v735, %v768
        %v772 = vmul.f32 %v736, %v769
        %v773 = vmul.f32 %v737, %v770
        %774 = vrot.lane.b32.xlu0 %v331, 32
        %v775 = vpop.permute.xlu0 %774
        %v777 = vmul.f32 %v771, %v775
        %v778 = vmul.f32 %v772, %v775
        %v779 = vmul.f32 %v773, %v775
        %780 = vrot.lane.b32.xlu0 %v338, 32
        %v781 = vpop.permute.xlu0 %780
        %v783 = vadd.f32 %v777, %v781
        %v784 = vadd.f32 %v778, %v781
        %v785 = vadd.f32 %v779, %v781
        %v786 = vpack.c.bf16 %v784, %v783
        %v787 = vpack.c.bf16 %v785, %v785
        %788 = vrot.lane.b32.xlu0 %v280, 64
        %v789 = vpop.permute.xlu0 %788
        %790 = vrot.lane.b32.xlu0 %v283, 64
        %v791 = vpop.permute.xlu0 %790
        %792 = vrot.lane.b32.xlu0 %v286, 64
        %v793 = vpop.permute.xlu0 %792
        %v797 = vsel %vm287, %v789, 0.0
        %798 = vadd.xlane.f32.xlu0 %v797
        %v799 = vpop.xlane.xlu0 %798
        %v800 = vsel %vm287, %v791, 0.0
        %801 = vadd.xlane.f32.xlu0 %v800
        %v802 = vpop.xlane.xlu0 %801
        %v803 = vsel %vm287, %v793, 0.0
        %804 = vadd.xlane.f32.xlu0 %v803
        %v805 = vpop.xlane.xlu0 %804
        %v806 = vmul.f32 %v799, %v297
        %v807 = vmul.f32 %v802, %v297
        %v808 = vmul.f32 %v805, %v297
        %v809 = vsub.f32 %v280, %v806
        %v810 = vsub.f32 %v283, %v807
        %v811 = vsub.f32 %v286, %v808
        %v812 = vmul.f32 %v809, %v809
        %v813 = vmul.f32 %v810, %v810
        %v814 = vmul.f32 %v811, %v811
        %818 = vrot.lane.b32.xlu0 %v812, 64
        %v819 = vpop.permute.xlu0 %818
        %820 = vrot.lane.b32.xlu0 %v813, 64
        %v821 = vpop.permute.xlu0 %820
        %822 = vrot.lane.b32.xlu0 %v814, 64
        %v823 = vpop.permute.xlu0 %822
        %v827 = vsel %vm287, %v819, 0.0
        %828 = vadd.xlane.f32.xlu0 %v827
        %v829 = vpop.xlane.xlu0 %828
        %v830 = vsel %vm287, %v821, 0.0
        %831 = vadd.xlane.f32.xlu0 %v830
        %v832 = vpop.xlane.xlu0 %831
        %v833 = vsel %vm287, %v823, 0.0
        %834 = vadd.xlane.f32.xlu0 %v833
        %v835 = vpop.xlane.xlu0 %834
        %v836 = vmul.f32 %v829, %v297
        %v837 = vmul.f32 %v832, %v297
        %v838 = vmul.f32 %v835, %v297
        %v839 = vadd.f32 %v836, 1e-06
        %v840 = vadd.f32 %v837, 1e-06
        %v841 = vadd.f32 %v838, 1e-06
        %v842 = vrsqrt.pop %v839
        %v843 = vrsqrt.pop %v840
        %v844 = vrsqrt.pop %v841
        %v845 = vmul.f32 %v809, %v842
        %v846 = vmul.f32 %v810, %v843
        %v847 = vmul.f32 %v811, %v844
        %848 = vrot.lane.b32.xlu0 %v410, 64
        %v849 = vpop.permute.xlu0 %848
        %v851 = vmul.f32 %v845, %v849
        %v852 = vmul.f32 %v846, %v849
        %v853 = vmul.f32 %v847, %v849
        %854 = vrot.lane.b32.xlu0 %v421, 64
        %v855 = vpop.permute.xlu0 %854
        %v857 = vadd.f32 %v851, %v855
        %v858 = vadd.f32 %v852, %v855
        %v859 = vadd.f32 %v853, %v855
        %v860 = vpack.c.bf16 %v858, %v857
        %v861 = vpack.c.bf16 %v859, %v859
        %864 = vrot.lane.b32.xlu0 %v507, 64
        %v865 = vpop.permute.xlu0 %864
        %866 = vrot.lane.b32.xlu0 %v508, 64
        %v867 = vpop.permute.xlu0 %866
        %870 = vrot.lane.b32.xlu0 %v786, 64
        %v871 = vpop.permute.xlu0 %870
        %872 = vrot.lane.b32.xlu0 %v787, 64
        %v873 = vpop.permute.xlu0 %872
        %v876 = vsel %vm287, %v342, %v865
        %v879 = vsel %vm287, %v343, %v867
        %vm880 = vcmask 523264
        %v882 = vsel %vm880, %v876, %v633
        %v884 = vsel %vm880, %v879, %v634
        %vm885 = vcmask 785408
        %v887 = vsel %vm885, %v882, %v871
        %v889 = vsel %vm885, %v884, %v873
        %v892 = vunpack.c.l.b16 %v887
        %v893 = vunpack.c.h.b16 %v887
        %v894 = vunpack.c.l.b16 %v889
        %v895 = vpack.c.b16 %v892, %v892
        %v896 = vpack.c.b16 %v893, %v893
        %v897 = vpack.c.b16 %v894, %v894
        %901 = vst [vmem:[%s255] sm:$0xf] %v895
        %902 = vst [vmem:[%s255 + $0x4] sm:$0xf] %v896
        %903 = vst [vmem:[%s255 + $0x8] sm:$0xf] %v897
        %906 = vrot.lane.b32.xlu0 %v429, 96
        %v907 = vpop.permute.xlu0 %906
        %908 = vrot.lane.b32.xlu0 %v430, 96
        %v909 = vpop.permute.xlu0 %908
        %912 = vrot.lane.b32.xlu0 %v554, 32
        %v913 = vpop.permute.xlu0 %912
        %914 = vrot.lane.b32.xlu0 %v555, 32
        %v915 = vpop.permute.xlu0 %914
        %918 = vrot.lane.b32.xlu0 %v707, 96
        %v919 = vpop.permute.xlu0 %918
        %920 = vrot.lane.b32.xlu0 %v708, 96
        %v921 = vpop.permute.xlu0 %920
        %924 = vrot.lane.b32.xlu0 %v860, 32
        %v925 = vpop.permute.xlu0 %924
        %926 = vrot.lane.b32.xlu0 %v861, 32
        %v927 = vpop.permute.xlu0 %926
        %v930 = vsel %vm287, %v907, %v913
        %v933 = vsel %vm287, %v909, %v915
        %v935 = vsel %vm880, %v930, %v919
        %v937 = vsel %vm880, %v933, %v921
        %v939 = vsel %vm885, %v935, %v925
        %v941 = vsel %vm885, %v937, %v927
        %v944 = vunpack.c.l.b16 %v939
        %v945 = vunpack.c.h.b16 %v939
        %v946 = vunpack.c.l.b16 %v941
        %v947 = vpack.c.b16 %v944, %v944
        %v948 = vpack.c.b16 %v945, %v945
        %v949 = vpack.c.b16 %v946, %v946
        %953 = vst [vmem:[%s262] sm:$0xf] %v947
        %954 = vst [vmem:[%s262 + $0x4] sm:$0xf] %v948
        %955 = vst [vmem:[%s262 + $0x8] sm:$0xf] %v949
        %958 = vrot.lane.b32.xlu0 %v431, 64
        %v959 = vpop.permute.xlu0 %958
        %960 = vrot.lane.b32.xlu0 %v432, 64
        %v961 = vpop.permute.xlu0 %960
        %964 = vrot.lane.b32.xlu0 %v709, 64
        %v965 = vpop.permute.xlu0 %964
        %966 = vrot.lane.b32.xlu0 %v710, 64
        %v967 = vpop.permute.xlu0 %966
        %v970 = vsel %vm287, %v959, %v556
        %v973 = vsel %vm287, %v961, %v557
        %v975 = vsel %vm880, %v970, %v965
        %v977 = vsel %vm880, %v973, %v967
        %v979 = vsel %vm885, %v975, %v709
        %v981 = vsel %vm885, %v977, %v710
        %v984 = vunpack.c.l.b16 %v979
        %v985 = vunpack.c.h.b16 %v979
        %v986 = vunpack.c.l.b16 %v981
        %v987 = vpack.c.b16 %v984, %v984
        %v988 = vpack.c.b16 %v985, %v985
        %v989 = vpack.c.b16 %v986, %v986
        %993 = vst [vmem:[%s269] sm:$0xf] %v987
        %994 = vst [vmem:[%s269 + $0x4] sm:$0xf] %v988
        %995 = vst [vmem:[%s269 + $0x8] sm:$0xf] %v989
        %s996 = sand.u32 %s97, 1
        %s997 = scalar_lea.sflag [#allocation4], %s996
        %s998 = sand.u32 %s97, 1
        %s999 = smul.addr %s998, 12
        %s1000 = scalar_lea.vmem [#allocation7], %s999
        %s1001 = sand.u32 %s26, 1
        %s1002 = scalar_lea.sflag [#allocation9], %s1001
        %s1003 = sand.u32 %s125, 1
        %s1004 = smul.addr %s1003, 12
        %s1005 = scalar_lea.vmem [#allocation8], %s1004
        %s1006 = sand.u32 %s26, 1
        %s1007 = scalar_lea.sflag [#allocation9], %s1006
        %s1008 = sand.u32 %s153, 1
        %s1009 = smul.addr %s1008, 12
        %s1010 = scalar_lea.vmem [#allocation10], %s1009
        // Predicated region
        $region37: #{tpu_custom_call.1} parent=27 // pred_check
          %p1011 = pneg %p107
        $region38: #{tpu_custom_call.1} parent=27 // pred_check_branch
          %1013 = sbr.rel (%p1011) target = $region40
        $region39: #{tpu_custom_call.1} parent=27 // pred_region
          %s1014 = smul.u32 3, %s31
          %s1016 = ssub.s32 192, 192
          %1017 = vsyncadd %s997, %s1016
          %s1018 = smul.addr %s30, 3
          %s1019 = sadd.s32 %s1014, %s1018
          %s1020 = smul.addr %s1019, 64
          %s1021 = scalar_lea.hbm %s2, %s1020
          %s1022 = sshll.u32 %s1000, 4
          %s1023 = int_to_ptr.vmem [resolvable:$true] %s1022
          %1028 = dma.vmem_to_hbm [thread:$0]  %s1023, 192, %s1021, %s997, 64, 64, 4
        $region40: #{tpu_custom_call.1} parent=27 // pred_fallthru
          _
        // Predicated region
        $region41: #{tpu_custom_call.1} parent=27 // pred_check
          %p1029 = pneg %p135
        $region42: #{tpu_custom_call.1} parent=27 // pred_check_branch
          %1031 = sbr.rel (%p1029) target = $region44
        $region43: #{tpu_custom_call.1} parent=27 // pred_region
          %s1032 = smul.u32 3, %s31
          %s1034 = ssub.s32 192, 192
          %1035 = vsyncadd %s1002, %s1034
          %s1036 = smul.addr %s30, 3
          %s1037 = sadd.s32 %s1032, %s1036
          %s1038 = smul.addr %s1037, 64
          %s1039 = scalar_lea.hbm %s3, %s1038
          %s1040 = sshll.u32 %s1005, 4
          %s1041 = int_to_ptr.vmem [resolvable:$true] %s1040
          %1046 = dma.vmem_to_hbm [thread:$0]  %s1041, 192, %s1039, %s1002, 64, 64, 4
        $region44: #{tpu_custom_call.1} parent=27 // pred_fallthru
          _
        // Predicated region
        $region45: #{tpu_custom_call.1} parent=27 // pred_check
          %p1047 = pneg %p163
        $region46: #{tpu_custom_call.1} parent=27 // pred_check_branch
          %1049 = sbr.rel (%p1047) target = $region48
        $region47: #{tpu_custom_call.1} parent=27 // pred_region
          %s1050 = smul.u32 3, %s31
          %s1052 = ssub.s32 192, 192
          %1053 = vsyncadd %s1007, %s1052
          %s1054 = smul.addr %s30, 3
          %s1055 = sadd.s32 %s1050, %s1054
          %s1056 = smul.addr %s1055, 64
          %s1057 = scalar_lea.hbm %s4, %s1056
          %s1058 = sshll.u32 %s1010, 4
          %s1059 = int_to_ptr.vmem [resolvable:$true] %s1058
          %1064 = dma.vmem_to_hbm [thread:$0]  %s1059, 192, %s1057, %s1007, 64, 64, 4
        $region48: #{tpu_custom_call.1} parent=27 // pred_fallthru
          _
      $region28: #{tpu_custom_call.1} parent=5 // pred_fallthru
        _
      %p1065 = scmp.le.s32.totalorder 2, %s21
      // Predicated region
      $region49: #{tpu_custom_call.1} parent=5 // pred_check
        %p1066 = pneg %p1065
      $region50: #{tpu_custom_call.1} parent=5 // pred_check_branch
        %1068 = sbr.rel (%p1066) target = $region52
      $region51: #{tpu_custom_call.1} parent=5 // pred_region
        %s1069 = ssub.s32 %s21, 2
        // Predicated region
        $region53: #{tpu_custom_call.1} parent=51 // pred_check
          %p1070 = pneg %p113
        $region54: #{tpu_custom_call.1} parent=51 // pred_check_branch
          %1072 = sbr.rel (%p1070) target = $region56
        $region55: #{tpu_custom_call.1} parent=51 // pred_region
          %s1073 = sand.u32 %s98, 1
          %s1074 = scalar_lea.sflag [#allocation4], %s1073
          %s1075 = sand.u32 %s98, 1
          %s1076 = smul.addr %s1075, 12
          %s1077 = scalar_lea.vmem [#allocation7], %s1076
          %1078 = dma.done %s1074, 192
        $region56: #{tpu_custom_call.1} parent=51 // pred_fallthru
          _
        // Predicated region
        $region57: #{tpu_custom_call.1} parent=51 // pred_check
          %p1079 = pneg %p141
        $region58: #{tpu_custom_call.1} parent=51 // pred_check_branch
          %1081 = sbr.rel (%p1079) target = $region60
        $region59: #{tpu_custom_call.1} parent=51 // pred_region
          %s1082 = sand.u32 %s27, 1
          %s1083 = scalar_lea.sflag [#allocation9], %s1082
          %s1084 = sand.u32 %s126, 1
          %s1085 = smul.addr %s1084, 12
          %s1086 = scalar_lea.vmem [#allocation8], %s1085
          %1087 = dma.done %s1083, 192
        $region60: #{tpu_custom_call.1} parent=51 // pred_fallthru
          _
        // Predicated region
        $region61: #{tpu_custom_call.1} parent=51 // pred_check
          %p1088 = pneg %p169
        $region62: #{tpu_custom_call.1} parent=51 // pred_check_branch
          %1090 = sbr.rel (%p1088) target = $region64
        $region63: #{tpu_custom_call.1} parent=51 // pred_region
          %s1091 = sand.u32 %s27, 1
          %s1092 = scalar_lea.sflag [#allocation9], %s1091
          %s1093 = sand.u32 %s154, 1
          %s1094 = smul.addr %s1093, 12
          %s1095 = scalar_lea.vmem [#allocation10], %s1094
          %1096 = dma.done %s1092, 192
        $region64: #{tpu_custom_call.1} parent=51 // pred_fallthru
          _
      $region52: #{tpu_custom_call.1} parent=5 // pred_fallthru
        _
    $region6: #{tpu_custom_call.1} parent=1 // loop_footer
      %s25 = sadd.s32 1, %s21
    $region7: #{tpu_custom_call.1} parent=1 // loop_footer_branch
      %20 = sbr.rel target = $region3
    $region8: #{tpu_custom_call.1} parent=1 // loop_exit
      _
    %1097 = vsyncpa [#allocation3], 1
    %s1098 = scalar_lea.sflag [#allocation3], 1
    %1099 = vsyncpa %s1098, 1
    %1100 = vsyncpa [#allocation6], 1
    %1101 = vsyncpa [#allocation4], 1
    %s1102 = scalar_lea.sflag [#allocation4], 1
    %1103 = vsyncpa %s1102, 1
    %1104 = vsyncpa [#allocation9], 1
    %s1105 = scalar_lea.sflag [#allocation9], 1
    %1106 = vsyncpa %s1105, 1

</llo_original>
